<compile_context>
chip_gen: v7x
topology: tpu7x:2x2x1
jax: 0.10.0
libtpu: 0.0.40
codegen_flags: <defaults>
</compile_context>

<pallas_src>
import math

import jax
import jax.numpy as jnp
import numpy as np
from jax import lax
from jax.experimental import pallas as pl
from jax.experimental.pallas import tpu as pltpu


def _wrap_i32(v):
    """Python int -> int32-representable value (two's complement wrap)."""
    v &= 0xFFFFFFFF
    return v - 0x100000000 if v >= 0x80000000 else v


_C_ROW = _wrap_i32(0x9E3779B1)   # golden-ratio odd constant (row salt)
_C_COL = _wrap_i32(0x85EBCA77)   # column salt
_M1 = _wrap_i32(0x7FEB352D)      # lowbias32 mixer constants
_M2 = _wrap_i32(0x846CA68B)
_SALT = _wrap_i32(0x68E31DA4)    # second-stream salt (u2)
_TWO_PI = 2.0 * math.pi
_INV_2_24 = 1.0 / float(1 << 24)


def _lshr(x, k):
    """Logical right shift for int32: arithmetic shift + mask of smeared sign bits."""
    mask = (1 << (32 - k)) - 1
    return jnp.bitwise_and(jnp.right_shift(x, k), jnp.int32(mask))


def _mix32(h):
    """splitmix32/lowbias32 finalizer: high-avalanche int32 -> int32 hash."""
    h = jnp.bitwise_xor(h, _lshr(h, 16))
    h = h * jnp.int32(_M1)
    h = jnp.bitwise_xor(h, _lshr(h, 15))
    h = h * jnp.int32(_M2)
    h = jnp.bitwise_xor(h, _lshr(h, 16))
    return h


def _uniform01(bits):
    """int32 hash bits -> f32 uniform in the open interval (0, 1) (log-safe)."""
    b24 = jnp.bitwise_and(bits, jnp.int32(0x00FFFFFF)).astype(jnp.float32)
    return (b24 + 0.5) * jnp.float32(_INV_2_24)


def _gaussian_noise_kernel(seed_ref, sigma_ref, x_ref, o_ref):
    """seed: SMEM (1,) i32 | sigma: VMEM (TM,1) f32 | x/o: VMEM (TM,TN) native dtype."""
    tm, tn = x_ref.shape
    i = pl.program_id(0)
    j = pl.program_id(1)
    seed = seed_ref[0]

    def hashed_uniform_pair(shape, col_stride):
        # Global element coordinates decorrelate tiles (identical seed per tile
        # would otherwise stamp the same noise everywhere).
        row = lax.broadcasted_iota(jnp.int32, shape, 0) + i * tm
        col = lax.broadcasted_iota(jnp.int32, shape, 1) + j * col_stride
        h0 = seed + row * jnp.int32(_C_ROW) + col * jnp.int32(_C_COL)
        u1 = _uniform01(_mix32(h0))
        u2 = _uniform01(_mix32(jnp.bitwise_xor(h0, jnp.int32(_SALT))))
        return u1, u2

    if tn % 256 == 0:
        # Use BOTH Box-Muller outputs: one (u1, u2) pair -> two standard
        # normals for two lane-halves, halving PRNG + log/sqrt EUP work.
        half = tn // 2
        u1, u2 = hashed_uniform_pair((tm, half), half)
        r = jnp.sqrt(-2.0 * jnp.log(u1))
        th = jnp.float32(_TWO_PI) * u2
        noise = jnp.concatenate([r * jnp.cos(th), r * jnp.sin(th)], axis=-1)
    else:
        # Fallback for lane-unaligned tiles: cos branch only.
        u1, u2 = hashed_uniform_pair((tm, tn), tn)
        noise = jnp.sqrt(-2.0 * jnp.log(u1)) * jnp.cos(jnp.float32(_TWO_PI) * u2)

    # x + noise * sigma[:, None]; math in f32, store in native output dtype.
    x_f32 = x_ref[...].astype(jnp.float32)
    o_ref[...] = (x_f32 + noise * sigma_ref[...]).astype(o_ref.dtype)


def _choose_tiles(B, n):
    """Lane-dense tiles: TN multiple of 128 (<=1024), TM multiple of 8 or ==B.

    (<=64, 1024) f32 tiles are ~256 KiB per buffer, so double-buffered in+out
    stays well under the scoped VMEM budget on v5e/v6e and v7x's 64 MiB VMEM,
    while sitting on the ~85% HBM-roofline plateau of the 512-1024 tile sweep.
    """
    tn = min(n, 1024) if n % 128 == 0 else n
    tm = min(B, 64) if B % 8 == 0 else B
    return tm, tn


@jax.jit
def fixed_gaussian_noise(x, sigma, seed=0):
    """Pallas equivalent of FixedGaussianNoise.forward(x, sigma).

    x:     [B, ...] (e.g. NCHW) -- any trailing dims, any float dtype.
    sigma: scalar, shape (1,), or shape (B,) -- broadcast like
           sigma[(...,) + (None,)*(x.ndim-1)] in the PyTorch module.
    seed:  traced int32 scalar; new values do NOT trigger recompilation.
    """
    orig_shape = x.shape
    B = int(orig_shape[0])
    n = 1
    for d in orig_shape[1:]:
        n *= int(d)

    x2 = x.reshape(B, n)  # native dtype; upcast happens in-register inside the kernel
    sigma_vec = jnp.asarray(sigma, jnp.float32).reshape(-1)
    sigma_b = jnp.broadcast_to(sigma_vec, (B,)).reshape(B, 1)
    seed_arr = jnp.asarray(seed, jnp.int32).reshape(1)

    tm, tn = _choose_tiles(B, n)
    grid = (pl.cdiv(B, tm), pl.cdiv(n, tn))

    # TODO(synk): input_output_aliases={2: 0} + buffer donation would cut peak
    # HBM footprint, but it changes caller-visible semantics (x is consumed),
    # so it is left off to match the out-of-place torch forward.
    out = pl.pallas_call(
        _gaussian_noise_kernel,
        out_shape=jax.ShapeDtypeStruct((B, n), x.dtype),
        grid=grid,
        in_specs=[
            pl.BlockSpec(memory_space=pltpu.MemorySpace.SMEM),   # seed scalar
            pl.BlockSpec((tm, 1), lambda i, j: (i, 0)),          # per-batch sigma column
            pl.BlockSpec((tm, tn), lambda i, j: (i, j)),         # x tile
        ],
        out_specs=pl.BlockSpec((tm, tn), lambda i, j: (i, j)),
        compiler_params=pltpu.CompilerParams(
            dimension_semantics=("parallel", "parallel")),
    )(seed_arr, sigma_b, x2)

    return out.reshape(orig_shape)


class FixedGaussianNoise:
    """Thin Python wrapper mirroring the torch module's interface (single device)."""

    def __init__(self, sigma=0.1):
        # deterministic "parameter" init, shape (1,) like to_nn_parameter(float)
        self.sigma = jnp.asarray(sigma, jnp.float32).reshape(-1)
        self._step = 0

    def __call__(self, x, sigma=None, seed=None, **kwargs):
        if sigma is not None:
            # TODO(synk): the torch forward's per-device torch.cat replication of
            # sigma (x.get_device() loop) is multi-GPU bookkeeping with no
            # single-device Pallas analogue; plain broadcast matches its math.
            self.sigma = jnp.asarray(sigma, jnp.float32).reshape(-1)
        if seed is None:
            # torch.randn_like draws fresh noise every forward; emulate with a
            # per-call counter folded into the traced seed (no recompiles).
            seed = self._step
        self._step += 1
        return fixed_gaussian_noise(x, self.sigma, seed)


if __name__ == "__main__":
    key = jax.random.PRNGKey(0)
    B, C, H, W = 2, 4, 16, 16
    x = jax.random.normal(key, (B, C, H, W), dtype=jnp.float32)

    module = FixedGaussianNoise(sigma=0.1)
    y = module(x, seed=1234)
    y = jax.block_until_ready(y)

    assert y.shape == x.shape and y.dtype == x.dtype
    assert bool(jnp.all(jnp.isfinite(y)))

    resid = np.asarray(y - x, dtype=np.float32)
    resid_std = float(resid.std())
    resid_mean = float(resid.mean())
    assert 0.05 < resid_std < 0.2, resid_std      # noise std should be near sigma=0.1
    assert abs(resid_mean) < 0.02, resid_mean     # zero-mean noise

    # A different seed must give different noise.
    y2 = jax.block_until_ready(module(x, seed=4321))
    assert float(np.abs(np.asarray(y2 - y)).max()) > 1e-4

    print("KERNEL_OK")
</pallas_src>

<mosaic_0001>
module attributes {stable_mosaic.version = 11 : i64} {
  func.func @_gaussian_noise_kernel(%arg0: i32, %arg1: i32, %arg2: memref<1xi32, #tpu.memory_space<smem>>, %arg3: memref<2x1xf32, #tpu.memory_space<vmem>>, %arg4: memref<2x1024xf32, #tpu.memory_space<vmem>>, %arg5: memref<2x1024xf32, #tpu.memory_space<vmem>>) attributes {dimension_semantics = [#tpu.dimension_semantics<parallel>, #tpu.dimension_semantics<parallel>], iteration_bounds = array<i64: 1, 1>, scalar_prefetch = 0 : i64, scratch_operands = 0 : i64, tpu.core_type = #tpu.core_type<tc>, window_params = [{transform_indices = @transform_0, window_bounds = array<i64: 1>}, {transform_indices = @transform_1, window_bounds = array<i64: 2, 1>}, {transform_indices = @transform_2, window_bounds = array<i64: 2, 1024>}, {transform_indices = @transform_3, window_bounds = array<i64: 2, 1024>}]} {
    %c0 = arith.constant 0 : index
    %0 = memref.load %arg2[%c0] : memref<1xi32, #tpu.memory_space<smem>>
    %1 = tpu.iota {dimensions = array<i32: 0>} : vector<2x512xi32>
    %c2_i32 = arith.constant 2 : i32
    %2 = arith.muli %arg0, %c2_i32 : i32
    %3 = vector.broadcast %2 : i32 to vector<2x512xi32>
    %4 = arith.addi %1, %3 : vector<2x512xi32>
    %5 = tpu.iota {dimensions = array<i32: 1>} : vector<2x512xi32>
    %c512_i32 = arith.constant 512 : i32
    %6 = arith.muli %arg1, %c512_i32 : i32
    %7 = vector.broadcast %6 : i32 to vector<2x512xi32>
    %8 = arith.addi %5, %7 : vector<2x512xi32>
    %c-1640531535_i32 = arith.constant -1640531535 : i32
    %9 = vector.broadcast %c-1640531535_i32 : i32 to vector<2x512xi32>
    %10 = arith.muli %4, %9 : vector<2x512xi32>
    %11 = vector.broadcast %0 : i32 to vector<2x512xi32>
    %12 = arith.addi %11, %10 : vector<2x512xi32>
    %c-2048144777_i32 = arith.constant -2048144777 : i32
    %13 = vector.broadcast %c-2048144777_i32 : i32 to vector<2x512xi32>
    %14 = arith.muli %8, %13 : vector<2x512xi32>
    %15 = arith.addi %12, %14 : vector<2x512xi32>
    %c16_i32 = arith.constant 16 : i32
    %16 = vector.broadcast %c16_i32 : i32 to vector<2x512xi32>
    %17 = arith.shrsi %15, %16 : vector<2x512xi32>
    %c65535_i32 = arith.constant 65535 : i32
    %18 = vector.broadcast %c65535_i32 : i32 to vector<2x512xi32>
    %19 = arith.andi %17, %18 : vector<2x512xi32>
    %20 = arith.xori %15, %19 : vector<2x512xi32>
    %c2146121005_i32 = arith.constant 2146121005 : i32
    %21 = vector.broadcast %c2146121005_i32 : i32 to vector<2x512xi32>
    %22 = arith.muli %20, %21 : vector<2x512xi32>
    %c15_i32 = arith.constant 15 : i32
    %23 = vector.broadcast %c15_i32 : i32 to vector<2x512xi32>
    %24 = arith.shrsi %22, %23 : vector<2x512xi32>
    %c131071_i32 = arith.constant 131071 : i32
    %25 = vector.broadcast %c131071_i32 : i32 to vector<2x512xi32>
    %26 = arith.andi %24, %25 : vector<2x512xi32>
    %27 = arith.xori %22, %26 : vector<2x512xi32>
    %c-2073254261_i32 = arith.constant -2073254261 : i32
    %28 = vector.broadcast %c-2073254261_i32 : i32 to vector<2x512xi32>
    %29 = arith.muli %27, %28 : vector<2x512xi32>
    %c16_i32_0 = arith.constant 16 : i32
    %30 = vector.broadcast %c16_i32_0 : i32 to vector<2x512xi32>
    %31 = arith.shrsi %29, %30 : vector<2x512xi32>
    %c65535_i32_1 = arith.constant 65535 : i32
    %32 = vector.broadcast %c65535_i32_1 : i32 to vector<2x512xi32>
    %33 = arith.andi %31, %32 : vector<2x512xi32>
    %34 = arith.xori %29, %33 : vector<2x512xi32>
    %c16777215_i32 = arith.constant 16777215 : i32
    %35 = vector.broadcast %c16777215_i32 : i32 to vector<2x512xi32>
    %36 = arith.andi %34, %35 : vector<2x512xi32>
    %37 = arith.sitofp %36 : vector<2x512xi32> to vector<2x512xf32>
    %cst = arith.constant 5.000000e-01 : f32
    %38 = vector.broadcast %cst : f32 to vector<2x512xf32>
    %39 = arith.addf %37, %38 : vector<2x512xf32>
    %cst_2 = arith.constant 5.96046448E-8 : f32
    %40 = vector.broadcast %cst_2 : f32 to vector<2x512xf32>
    %41 = arith.mulf %39, %40 : vector<2x512xf32>
    %c1759714724_i32 = arith.constant 1759714724 : i32
    %42 = vector.broadcast %c1759714724_i32 : i32 to vector<2x512xi32>
    %43 = arith.xori %15, %42 : vector<2x512xi32>
    %c16_i32_3 = arith.constant 16 : i32
    %44 = vector.broadcast %c16_i32_3 : i32 to vector<2x512xi32>
    %45 = arith.shrsi %43, %44 : vector<2x512xi32>
    %c65535_i32_4 = arith.constant 65535 : i32
    %46 = vector.broadcast %c65535_i32_4 : i32 to vector<2x512xi32>
    %47 = arith.andi %45, %46 : vector<2x512xi32>
    %48 = arith.xori %43, %47 : vector<2x512xi32>
    %c2146121005_i32_5 = arith.constant 2146121005 : i32
    %49 = vector.broadcast %c2146121005_i32_5 : i32 to vector<2x512xi32>
    %50 = arith.muli %48, %49 : vector<2x512xi32>
    %c15_i32_6 = arith.constant 15 : i32
    %51 = vector.broadcast %c15_i32_6 : i32 to vector<2x512xi32>
    %52 = arith.shrsi %50, %51 : vector<2x512xi32>
    %c131071_i32_7 = arith.constant 131071 : i32
    %53 = vector.broadcast %c131071_i32_7 : i32 to vector<2x512xi32>
    %54 = arith.andi %52, %53 : vector<2x512xi32>
    %55 = arith.xori %50, %54 : vector<2x512xi32>
    %c-2073254261_i32_8 = arith.constant -2073254261 : i32
    %56 = vector.broadcast %c-2073254261_i32_8 : i32 to vector<2x512xi32>
    %57 = arith.muli %55, %56 : vector<2x512xi32>
    %c16_i32_9 = arith.constant 16 : i32
    %58 = vector.broadcast %c16_i32_9 : i32 to vector<2x512xi32>
    %59 = arith.shrsi %57, %58 : vector<2x512xi32>
    %c65535_i32_10 = arith.constant 65535 : i32
    %60 = vector.broadcast %c65535_i32_10 : i32 to vector<2x512xi32>
    %61 = arith.andi %59, %60 : vector<2x512xi32>
    %62 = arith.xori %57, %61 : vector<2x512xi32>
    %c16777215_i32_11 = arith.constant 16777215 : i32
    %63 = vector.broadcast %c16777215_i32_11 : i32 to vector<2x512xi32>
    %64 = arith.andi %62, %63 : vector<2x512xi32>
    %65 = arith.sitofp %64 : vector<2x512xi32> to vector<2x512xf32>
    %cst_12 = arith.constant 5.000000e-01 : f32
    %66 = vector.broadcast %cst_12 : f32 to vector<2x512xf32>
    %67 = arith.addf %65, %66 : vector<2x512xf32>
    %cst_13 = arith.constant 5.96046448E-8 : f32
    %68 = vector.broadcast %cst_13 : f32 to vector<2x512xf32>
    %69 = arith.mulf %67, %68 : vector<2x512xf32>
    %70 = math.log %41 : vector<2x512xf32>
    %cst_14 = arith.constant -2.000000e+00 : f32
    %71 = vector.broadcast %cst_14 : f32 to vector<2x512xf32>
    %72 = arith.mulf %71, %70 : vector<2x512xf32>
    %73 = math.sqrt %72 : vector<2x512xf32>
    %cst_15 = arith.constant 6.28318548 : f32
    %74 = vector.broadcast %cst_15 : f32 to vector<2x512xf32>
    %75 = arith.mulf %74, %69 : vector<2x512xf32>
    %76 = math.cos %75 : vector<2x512xf32>
    %77 = arith.mulf %73, %76 : vector<2x512xf32>
    %78 = math.sin %75 : vector<2x512xf32>
    %79 = arith.mulf %73, %78 : vector<2x512xf32>
    %80 = tpu.concatenate %77, %79 in 1 : vector<2x512xf32>, vector<2x512xf32> -> vector<2x1024xf32>
    %c0_16 = arith.constant 0 : index
    %c0_17 = arith.constant 0 : index
    %81 = vector.load %arg4[%c0_16, %c0_17] : memref<2x1024xf32, #tpu.memory_space<vmem>>, vector<2x1024xf32>
    %c0_18 = arith.constant 0 : index
    %c0_19 = arith.constant 0 : index
    %82 = vector.load %arg3[%c0_18, %c0_19] : memref<2x1xf32, #tpu.memory_space<vmem>>, vector<2x1xf32>
    %83 = vector.broadcast %82 : vector<2x1xf32> to vector<2x1024xf32>
    %84 = arith.mulf %80, %83 : vector<2x1024xf32>
    %85 = arith.addf %81, %84 : vector<2x1024xf32>
    %c0_20 = arith.constant 0 : index
    %c0_21 = arith.constant 0 : index
    %86 = vector.load %arg5[%c0_20, %c0_21] : memref<2x1024xf32, #tpu.memory_space<vmem>>, vector<2x1024xf32>
    tpu.vector_store %arg5[%c0_20, %c0_21], %85 {strides = array<i32>} : memref<2x1024xf32, #tpu.memory_space<vmem>>, vector<2x1024xf32>,
    return
  }
  func.func @transform_0(%arg0: i32, %arg1: i32) -> i32 {
    %c0_i32 = arith.constant 0 : i32
    %c0_i32_0 = arith.constant 0 : i32
    return %c0_i32 : i32
  }
  func.func @transform_1(%arg0: i32, %arg1: i32) -> (i32, i32) {
    %c0_i32 = arith.constant 0 : i32
    %c0_i32_0 = arith.constant 0 : i32
    return %arg0, %c0_i32 : i32, i32
  }
  func.func @transform_2(%arg0: i32, %arg1: i32) -> (i32, i32) {
    %c0_i32 = arith.constant 0 : i32
    return %arg0, %arg1 : i32, i32
  }
  func.func @transform_3(%arg0: i32, %arg1: i32) -> (i32, i32) {
    %c0_i32 = arith.constant 0 : i32
    return %arg0, %arg1 : i32, i32
  }
}

</mosaic_0001>

<llo_original>
// kernel: fixed_gaussian_noise.1
$region0: #{fixed_gaussian_noise.1}
  #allocation0 [shape = 'u32[]', space=smem, size = 0x4, offset = 0x4, fixed_abs, tag = 'smem constant byte address 0x4 - core index']
  #allocation1 [shape = 'u32[144,128]{1,0:T(1,128)}', space=vmem, size = 0x12000, scoped, tag = 'internal scratch']
  #allocation2 [shape = 's32[1]{0:T(128)S(6)}', space=smem, size = 0x200, scoped, tag = 'scoped memory for fixed_gaussian_noise.1']
  %s0 = inlined_call_operand.<no memory space> [shape: s32[1], index: 0, kind: input, shape index: {}]
  %s1 = inlined_call_operand.vmem [shape: f32[2,1], index: 1, kind: input, shape index: {}]
  %s2 = inlined_call_operand.vmem [shape: f32[2,1024], index: 2, kind: input, shape index: {}]
  %s3 = inlined_call_operand.vmem [shape: f32[2,1024], index: 3, kind: output, shape index: {}]
  %s4 = sld [smem:[#allocation0]]
  $region22: #{fixed_gaussian_noise.1} parent=0
    _
  %s6 = ssub.s32 1, %s4
  %s7 = scalar_select 0, %s6, %s4
  %8 = sst [smem:[#allocation2]] %s0
  // Predicated region
  $region2: #{fixed_gaussian_noise.1} parent=0 // pred_check
    _
  $region3: #{fixed_gaussian_noise.1} parent=0 // pred_check_branch
    %10 = sbr.rel (0) target = $region5
  $region4: #{fixed_gaussian_noise.1} parent=0 // pred_region
    _
  $region5: #{fixed_gaussian_noise.1} parent=0 // pred_fallthru
    _
  // Predicated region
  $region6: #{fixed_gaussian_noise.1} parent=0 // pred_check
    _
  $region7: #{fixed_gaussian_noise.1} parent=0 // pred_check_branch
    %12 = sbr.rel (0) target = $region9
  $region8: #{fixed_gaussian_noise.1} parent=0 // pred_region
    _
  $region9: #{fixed_gaussian_noise.1} parent=0 // pred_fallthru
    _
  // Predicated region
  $region10: #{fixed_gaussian_noise.1} parent=0 // pred_check
    _
  $region11: #{fixed_gaussian_noise.1} parent=0 // pred_check_branch
    %14 = sbr.rel (0) target = $region13
  $region12: #{fixed_gaussian_noise.1} parent=0 // pred_region
    _
  $region13: #{fixed_gaussian_noise.1} parent=0 // pred_fallthru
    _
  %s15 = sld [smem:[#allocation2]]
  %v16 = vlaneseq
  %v17 = vshrl.u32 %v16, 7
  %s18 = smul.u32 0, 2
  %v19 = vstv %s18
  %v20 = vadd.s32 %v17, %v19
  %v21 = vlaneseq
  %v22 = vand.u32 %v21, 127
  %v23 = vadd.s32 %v22, 128
  %v24 = vadd.s32 %v22, 256
  %v25 = vadd.s32 %v22, 384
  %s26 = smul.u32 0, 512
  %v27 = vstv %s26
  %v28 = vadd.s32 %v22, %v27
  %v29 = vadd.s32 %v23, %v27
  %v30 = vadd.s32 %v24, %v27
  %v31 = vadd.s32 %v25, %v27
  %v32 = vmul.u32 %v20, 2654435761
  %v33 = vstv %s15
  %v34 = vadd.s32 %v33, %v32
  %v35 = vmul.u32 %v28, 2246822519
  %v36 = vmul.u32 %v29, 2246822519
  %v37 = vmul.u32 %v30, 2246822519
  %v38 = vmul.u32 %v31, 2246822519
  %v39 = vadd.s32 %v34, %v35
  %v40 = vadd.s32 %v34, %v36
  %v41 = vadd.s32 %v34, %v37
  %v42 = vadd.s32 %v34, %v38
  %v43 = vshra.s32 %v39, 16
  %v44 = vshra.s32 %v40, 16
  %v45 = vshra.s32 %v41, 16
  %v46 = vshra.s32 %v42, 16
  %v47 = vand.u32 %v43, 65535
  %v48 = vand.u32 %v44, 65535
  %v49 = vand.u32 %v45, 65535
  %v50 = vand.u32 %v46, 65535
  %v51 = vxor.u32 %v39, %v47
  %v52 = vxor.u32 %v40, %v48
  %v53 = vxor.u32 %v41, %v49
  %v54 = vxor.u32 %v42, %v50
  %v55 = vmul.u32 %v51, 2146121005
  %v56 = vmul.u32 %v52, 2146121005
  %v57 = vmul.u32 %v53, 2146121005
  %v58 = vmul.u32 %v54, 2146121005
  %v59 = vshra.s32 %v55, 15
  %v60 = vshra.s32 %v56, 15
  %v61 = vshra.s32 %v57, 15
  %v62 = vshra.s32 %v58, 15
  %v63 = vand.u32 %v59, 131071
  %v64 = vand.u32 %v60, 131071
  %v65 = vand.u32 %v61, 131071
  %v66 = vand.u32 %v62, 131071
  %v67 = vxor.u32 %v55, %v63
  %v68 = vxor.u32 %v56, %v64
  %v69 = vxor.u32 %v57, %v65
  %v70 = vxor.u32 %v58, %v66
  %v71 = vmul.u32 %v67, 2221713035
  %v72 = vmul.u32 %v68, 2221713035
  %v73 = vmul.u32 %v69, 2221713035
  %v74 = vmul.u32 %v70, 2221713035
  %v75 = vshra.s32 %v71, 16
  %v76 = vshra.s32 %v72, 16
  %v77 = vshra.s32 %v73, 16
  %v78 = vshra.s32 %v74, 16
  %v79 = vand.u32 %v75, 65535
  %v80 = vand.u32 %v76, 65535
  %v81 = vand.u32 %v77, 65535
  %v82 = vand.u32 %v78, 65535
  %v83 = vxor.u32 %v71, %v79
  %v84 = vxor.u32 %v72, %v80
  %v85 = vxor.u32 %v73, %v81
  %v86 = vxor.u32 %v74, %v82
  %v87 = vand.u32 %v83, 16777215
  %v88 = vand.u32 %v84, 16777215
  %v89 = vand.u32 %v85, 16777215
  %v90 = vand.u32 %v86, 16777215
  %v91 = vcvt.s32.f32 %v87
  %v92 = vcvt.s32.f32 %v88
  %v93 = vcvt.s32.f32 %v89
  %v94 = vcvt.s32.f32 %v90
  %v95 = vadd.f32 %v91, 0.5
  %v96 = vadd.f32 %v92, 0.5
  %v97 = vadd.f32 %v93, 0.5
  %v98 = vadd.f32 %v94, 0.5
  %v99 = vmul.f32 %v95, 5.9604645e-08
  %v100 = vmul.f32 %v96, 5.9604645e-08
  %v101 = vmul.f32 %v97, 5.9604645e-08
  %v102 = vmul.f32 %v98, 5.9604645e-08
  %v103 = vxor.u32 %v39, 1759714724
  %v104 = vxor.u32 %v40, 1759714724
  %v105 = vxor.u32 %v41, 1759714724
  %v106 = vxor.u32 %v42, 1759714724
  %v107 = vshra.s32 %v103, 16
  %v108 = vshra.s32 %v104, 16
  %v109 = vshra.s32 %v105, 16
  %v110 = vshra.s32 %v106, 16
  %v111 = vand.u32 %v107, 65535
  %v112 = vand.u32 %v108, 65535
  %v113 = vand.u32 %v109, 65535
  %v114 = vand.u32 %v110, 65535
  %v115 = vxor.u32 %v103, %v111
  %v116 = vxor.u32 %v104, %v112
  %v117 = vxor.u32 %v105, %v113
  %v118 = vxor.u32 %v106, %v114
  %v119 = vmul.u32 %v115, 2146121005
  %v120 = vmul.u32 %v116, 2146121005
  %v121 = vmul.u32 %v117, 2146121005
  %v122 = vmul.u32 %v118, 2146121005
  %v123 = vshra.s32 %v119, 15
  %v124 = vshra.s32 %v120, 15
  %v125 = vshra.s32 %v121, 15
  %v126 = vshra.s32 %v122, 15
  %v127 = vand.u32 %v123, 131071
  %v128 = vand.u32 %v124, 131071
  %v129 = vand.u32 %v125, 131071
  %v130 = vand.u32 %v126, 131071
  %v131 = vxor.u32 %v119, %v127
  %v132 = vxor.u32 %v120, %v128
  %v133 = vxor.u32 %v121, %v129
  %v134 = vxor.u32 %v122, %v130
  %v135 = vmul.u32 %v131, 2221713035
  %v136 = vmul.u32 %v132, 2221713035
  %v137 = vmul.u32 %v133, 2221713035
  %v138 = vmul.u32 %v134, 2221713035
  %v139 = vshra.s32 %v135, 16
  %v140 = vshra.s32 %v136, 16
  %v141 = vshra.s32 %v137, 16
  %v142 = vshra.s32 %v138, 16
  %v143 = vand.u32 %v139, 65535
  %v144 = vand.u32 %v140, 65535
  %v145 = vand.u32 %v141, 65535
  %v146 = vand.u32 %v142, 65535
  %v147 = vxor.u32 %v135, %v143
  %v148 = vxor.u32 %v136, %v144
  %v149 = vxor.u32 %v137, %v145
  %v150 = vxor.u32 %v138, %v146
  %v151 = vand.u32 %v147, 16777215
  %v152 = vand.u32 %v148, 16777215
  %v153 = vand.u32 %v149, 16777215
  %v154 = vand.u32 %v150, 16777215
  %v155 = vcvt.s32.f32 %v151
  %v156 = vcvt.s32.f32 %v152
  %v157 = vcvt.s32.f32 %v153
  %v158 = vcvt.s32.f32 %v154
  %v159 = vadd.f32 %v155, 0.5
  %v160 = vadd.f32 %v156, 0.5
  %v161 = vadd.f32 %v157, 0.5
  %v162 = vadd.f32 %v158, 0.5
  %v163 = vmul.f32 %v159, 5.9604645e-08
  %v164 = vmul.f32 %v160, 5.9604645e-08
  %v165 = vmul.f32 %v161, 5.9604645e-08
  %v166 = vmul.f32 %v162, 5.9604645e-08
  %v167 = vlog2.pop %v99
  %v168 = vmul.f32 %v167, 0.6931472
  %v169 = vlog2.pop %v100
  %v170 = vmul.f32 %v169, 0.6931472
  %v171 = vlog2.pop %v101
  %v172 = vmul.f32 %v171, 0.6931472
  %v173 = vlog2.pop %v102
  %v174 = vmul.f32 %v173, 0.6931472
  %v175 = vmul.f32 %v168, -2.0
  %v176 = vmul.f32 %v170, -2.0
  %v177 = vmul.f32 %v172, -2.0
  %v178 = vmul.f32 %v174, -2.0
  %v179 = vrsqrt.pop %v175
  %v180 = vmul.f32 %v175, %v179
  %vm181 = vcmp.eq.f32.partialorder %v175, inf
  %v182 = vsel %vm181, %v175, %v180
  %vm183 = vcmp.eq.f32.partialorder %v175, 0.0
  %v184 = vand.u32 %v175, 2147483648
  %v185 = vsel %vm183, %v184, %v182
  %v186 = vrsqrt.pop %v176
  %v187 = vmul.f32 %v176, %v186
  %vm188 = vcmp.eq.f32.partialorder %v176, inf
  %v189 = vsel %vm188, %v176, %v187
  %vm190 = vcmp.eq.f32.partialorder %v176, 0.0
  %v191 = vand.u32 %v176, 2147483648
  %v192 = vsel %vm190, %v191, %v189
  %v193 = vrsqrt.pop %v177
  %v194 = vmul.f32 %v177, %v193
  %vm195 = vcmp.eq.f32.partialorder %v177, inf
  %v196 = vsel %vm195, %v177, %v194
  %vm197 = vcmp.eq.f32.partialorder %v177, 0.0
  %v198 = vand.u32 %v177, 2147483648
  %v199 = vsel %vm197, %v198, %v196
  %v200 = vrsqrt.pop %v178
  %v201 = vmul.f32 %v178, %v200
  %vm202 = vcmp.eq.f32.partialorder %v178, inf
  %v203 = vsel %vm202, %v178, %v201
  %vm204 = vcmp.eq.f32.partialorder %v178, 0.0
  %v205 = vand.u32 %v178, 2147483648
  %v206 = vsel %vm204, %v205, %v203
  %v207 = vmul.f32 %v163, 6.2831855
  %v208 = vmul.f32 %v164, 6.2831855
  %v209 = vmul.f32 %v165, 6.2831855
  %v210 = vmul.f32 %v166, 6.2831855
  %v211 = vand.u32 2147483647, %v207
  %vm212 = vcmp.le.f32.partialorder %v211, 0.7853982
  %vm213 = vcmp.lt.s32.totalorder %v207, 0
  %v214 = vand.u32 %v207, 2139095040
  %v215 = vshrl.u32 %v214, 23
  %v216 = vsub.s32 %v215, 127
  %v217 = vand.u32 2147483647, %v207
  %v218 = vand.u32 %v217, 8388607
  %v219 = vor.u32 %v218, 8388608
  %v220 = vsub.s32 0, %v219
  %v221 = vadd.s32 %v216, 1
  %vm222 = vcmp.gt.s32.totalorder %v221, 0
  %v223 = vsel %vm222, %v221, 0
  %v224 = vshrl.u32 %v223, 5
  %v225 = vand.u32 %v223, 31
  %v226 = vsub.s32 32, %v225
  %v227 = vshrl.u32 683565275, %v226
  %v228 = vshll.u32 683565275, %v225
  %v229 = vshrl.u32 2475754826, %v226
  %v230 = vor.u32 %v228, %v229
  %v231 = vshll.u32 2475754826, %v225
  %v232 = vshrl.u32 2131351028, %v226
  %v233 = vor.u32 %v231, %v232
  %v234 = vshll.u32 2131351028, %v225
  %v235 = vshrl.u32 2102212464, %v226
  %v236 = vor.u32 %v234, %v235
  %v237 = vshll.u32 2102212464, %v225
  %v238 = vshrl.u32 920167782, %v226
  %v239 = vor.u32 %v237, %v238
  %v240 = vshll.u32 920167782, %v225
  %v241 = vshrl.u32 1326507024, %v226
  %v242 = vor.u32 %v240, %v241
  %vm243 = vcmp.lt.s32.totalorder %v224, 1
  %vm244 = vcmp.lt.s32.totalorder %v224, 2
  %vm245 = vcmp.lt.s32.totalorder %v224, 3
  %vm246 = vcmp.lt.s32.totalorder %v224, 4
  %v247 = vsel %vm243, %v227, %v230
  %v248 = vsel %vm246, %v236, 2102212464
  %v249 = vsel %vm245, %v233, %v248
  %v250 = vsel %vm244, %v247, %v249
  %v251 = vsel %vm243, %v230, %v233
  %v252 = vsel %vm246, %v239, 920167782
  %v253 = vsel %vm245, %v236, %v252
  %v254 = vsel %vm244, %v251, %v253
  %v255 = vsel %vm243, %v233, %v236
  %v256 = vsel %vm246, %v242, 1326507024
  %v257 = vsel %vm245, %v239, %v256
  %v258 = vsel %vm244, %v255, %v257
  %v259 = vshll.u32 %v219, 8
  %v260 = vmul.u32.u64.compose %v259, %v258
  %v261 = vextract.low.u32 %v260
  %v262 = vextract.high.u32 %v260
  %v263 = vmul.u32.u64.compose %v259, %v254
  %v264 = vextract.low.u32 %v263
  %v265 = vextract.high.u32 %v263
  %v266 = vmul.u32 %v259, %v250
  %v267 = vadd.s32 %v262, %v264
  %vm268 = vc.u32 %v262, %v264
  %v269 = vadd.s32 %v265, 1
  %v270 = vsel %vm268, %v269, %v265
  %v271 = vadd.s32 %v266, %v270
  %v272 = vadd.s32 %v271, 536870912
  %v273 = vshrl.u32 %v272, 30
  %v274 = vshll.u32 %v273, 30
  %v275 = vsub.s32 %v271, %v274
  %vm276 = vcmp.lt.s32.totalorder %v275, 0
  %v277 = vsub.s32 0, %v275
  %v278 = vsel %vm276, %v277, %v275
  %v279 = vclz %v278
  %v280 = vsub.s32 %v279, 2
  %vm281 = vcmp.gt.s32.totalorder 0, %v280
  %v282 = vsel %vm281, 0, %v280
  %v283 = vsub.s32 32, %v282
  %v284 = vshll.u32 %v275, %v282
  %v285 = vshrl.u32 %v267, %v283
  %v286 = vor.u32 %v284, %v285
  %v287 = vsub.s32 4294967266, %v282
  %v288 = vadd.s32 %v287, 127
  %v289 = vshll.u32 %v288, 23
  %v290 = vor.u32 4788187, %v289
  %v291 = vand.u32 2147483647, %v290
  %v293 = vcvt.s32.f32 %v286
  %v294 = vmul.f32 %v293, %v291
  %v295 = vxor.u32 %v294, 2147483648
  %v296 = vsel %vm213, %v295, %v294
  %v297 = vsub.s32 4, %v273
  %v298 = vsel %vm213, %v297, %v273
  %v299 = vsel %vm212, %v207, %v296
  %v300 = vsel %vm212, 0, %v298
  %v301 = vcosq.f32.pop %v299
  %v302 = vsinq.f32.pop %v299
  %vm303 = vweird.f32 %v207
  %v304 = vand.u32 %v300, 3
  %vm305 = vcmp.lt.s32.totalorder %v304, 2
  %vm306 = vcmp.eq.s32.totalorder %v304, 0
  %v307 = vxor.u32 %v302, 2147483648
  %v308 = vsel %vm306, %v301, %v307
  %vm309 = vcmp.eq.s32.totalorder %v304, 2
  %v310 = vxor.u32 %v301, 2147483648
  %v311 = vsel %vm309, %v310, %v302
  %v312 = vsel %vm305, %v308, %v311
  %v313 = vsel %vm303, nan, %v312
  %v314 = vand.u32 2147483647, %v208
  %vm315 = vcmp.le.f32.partialorder %v314, 0.7853982
  %vm316 = vcmp.lt.s32.totalorder %v208, 0
  %v317 = vand.u32 %v208, 2139095040
  %v318 = vshrl.u32 %v317, 23
  %v319 = vsub.s32 %v318, 127
  %v320 = vand.u32 2147483647, %v208
  %v321 = vand.u32 %v320, 8388607
  %v322 = vor.u32 %v321, 8388608
  %v323 = vsub.s32 0, %v322
  %v324 = vadd.s32 %v319, 1
  %vm325 = vcmp.gt.s32.totalorder %v324, 0
  %v326 = vsel %vm325, %v324, 0
  %v327 = vshrl.u32 %v326, 5
  %v328 = vand.u32 %v326, 31
  %v329 = vsub.s32 32, %v328
  %v330 = vshrl.u32 683565275, %v329
  %v331 = vshll.u32 683565275, %v328
  %v332 = vshrl.u32 2475754826, %v329
  %v333 = vor.u32 %v331, %v332
  %v334 = vshll.u32 2475754826, %v328
  %v335 = vshrl.u32 2131351028, %v329
  %v336 = vor.u32 %v334, %v335
  %v337 = vshll.u32 2131351028, %v328
  %v338 = vshrl.u32 2102212464, %v329
  %v339 = vor.u32 %v337, %v338
  %v340 = vshll.u32 2102212464, %v328
  %v341 = vshrl.u32 920167782, %v329
  %v342 = vor.u32 %v340, %v341
  %v343 = vshll.u32 920167782, %v328
  %v344 = vshrl.u32 1326507024, %v329
  %v345 = vor.u32 %v343, %v344
  %vm346 = vcmp.lt.s32.totalorder %v327, 1
  %vm347 = vcmp.lt.s32.totalorder %v327, 2
  %vm348 = vcmp.lt.s32.totalorder %v327, 3
  %vm349 = vcmp.lt.s32.totalorder %v327, 4
  %v350 = vsel %vm346, %v330, %v333
  %v351 = vsel %vm349, %v339, 2102212464
  %v352 = vsel %vm348, %v336, %v351
  %v353 = vsel %vm347, %v350, %v352
  %v354 = vsel %vm346, %v333, %v336
  %v355 = vsel %vm349, %v342, 920167782
  %v356 = vsel %vm348, %v339, %v355
  %v357 = vsel %vm347, %v354, %v356
  %v358 = vsel %vm346, %v336, %v339
  %v359 = vsel %vm349, %v345, 1326507024
  %v360 = vsel %vm348, %v342, %v359
  %v361 = vsel %vm347, %v358, %v360
  %v362 = vshll.u32 %v322, 8
  %v363 = vmul.u32.u64.compose %v362, %v361
  %v364 = vextract.low.u32 %v363
  %v365 = vextract.high.u32 %v363
  %v366 = vmul.u32.u64.compose %v362, %v357
  %v367 = vextract.low.u32 %v366
  %v368 = vextract.high.u32 %v366
  %v369 = vmul.u32 %v362, %v353
  %v370 = vadd.s32 %v365, %v367
  %vm371 = vc.u32 %v365, %v367
  %v372 = vadd.s32 %v368, 1
  %v373 = vsel %vm371, %v372, %v368
  %v374 = vadd.s32 %v369, %v373
  %v375 = vadd.s32 %v374, 536870912
  %v376 = vshrl.u32 %v375, 30
  %v377 = vshll.u32 %v376, 30
  %v378 = vsub.s32 %v374, %v377
  %vm379 = vcmp.lt.s32.totalorder %v378, 0
  %v380 = vsub.s32 0, %v378
  %v381 = vsel %vm379, %v380, %v378
  %v382 = vclz %v381
  %v383 = vsub.s32 %v382, 2
  %vm384 = vcmp.gt.s32.totalorder 0, %v383
  %v385 = vsel %vm384, 0, %v383
  %v386 = vsub.s32 32, %v385
  %v387 = vshll.u32 %v378, %v385
  %v388 = vshrl.u32 %v370, %v386
  %v389 = vor.u32 %v387, %v388
  %v390 = vsub.s32 4294967266, %v385
  %v391 = vadd.s32 %v390, 127
  %v392 = vshll.u32 %v391, 23
  %v393 = vor.u32 4788187, %v392
  %v394 = vand.u32 2147483647, %v393
  %v396 = vcvt.s32.f32 %v389
  %v397 = vmul.f32 %v396, %v394
  %v398 = vxor.u32 %v397, 2147483648
  %v399 = vsel %vm316, %v398, %v397
  %v400 = vsub.s32 4, %v376
  %v401 = vsel %vm316, %v400, %v376
  %v402 = vsel %vm315, %v208, %v399
  %v403 = vsel %vm315, 0, %v401
  %v404 = vcosq.f32.pop %v402
  %v405 = vsinq.f32.pop %v402
  %vm406 = vweird.f32 %v208
  %v407 = vand.u32 %v403, 3
  %vm408 = vcmp.lt.s32.totalorder %v407, 2
  %vm409 = vcmp.eq.s32.totalorder %v407, 0
  %v410 = vxor.u32 %v405, 2147483648
  %v411 = vsel %vm409, %v404, %v410
  %vm412 = vcmp.eq.s32.totalorder %v407, 2
  %v413 = vxor.u32 %v404, 2147483648
  %v414 = vsel %vm412, %v413, %v405
  %v415 = vsel %vm408, %v411, %v414
  %v416 = vsel %vm406, nan, %v415
  %v417 = vand.u32 2147483647, %v209
  %vm418 = vcmp.le.f32.partialorder %v417, 0.7853982
  %vm419 = vcmp.lt.s32.totalorder %v209, 0
  %v420 = vand.u32 %v209, 2139095040
  %v421 = vshrl.u32 %v420, 23
  %v422 = vsub.s32 %v421, 127
  %v423 = vand.u32 2147483647, %v209
  %v424 = vand.u32 %v423, 8388607
  %v425 = vor.u32 %v424, 8388608
  %v426 = vsub.s32 0, %v425
  %v427 = vadd.s32 %v422, 1
  %vm428 = vcmp.gt.s32.totalorder %v427, 0
  %v429 = vsel %vm428, %v427, 0
  %v430 = vshrl.u32 %v429, 5
  %v431 = vand.u32 %v429, 31
  %v432 = vsub.s32 32, %v431
  %v433 = vshrl.u32 683565275, %v432
  %v434 = vshll.u32 683565275, %v431
  %v435 = vshrl.u32 2475754826, %v432
  %v436 = vor.u32 %v434, %v435
  %v437 = vshll.u32 2475754826, %v431
  %v438 = vshrl.u32 2131351028, %v432
  %v439 = vor.u32 %v437, %v438
  %v440 = vshll.u32 2131351028, %v431
  %v441 = vshrl.u32 2102212464, %v432
  %v442 = vor.u32 %v440, %v441
  %v443 = vshll.u32 2102212464, %v431
  %v444 = vshrl.u32 920167782, %v432
  %v445 = vor.u32 %v443, %v444
  %v446 = vshll.u32 920167782, %v431
  %v447 = vshrl.u32 1326507024, %v432
  %v448 = vor.u32 %v446, %v447
  %vm449 = vcmp.lt.s32.totalorder %v430, 1
  %vm450 = vcmp.lt.s32.totalorder %v430, 2
  %vm451 = vcmp.lt.s32.totalorder %v430, 3
  %vm452 = vcmp.lt.s32.totalorder %v430, 4
  %v453 = vsel %vm449, %v433, %v436
  %v454 = vsel %vm452, %v442, 2102212464
  %v455 = vsel %vm451, %v439, %v454
  %v456 = vsel %vm450, %v453, %v455
  %v457 = vsel %vm449, %v436, %v439
  %v458 = vsel %vm452, %v445, 920167782
  %v459 = vsel %vm451, %v442, %v458
  %v460 = vsel %vm450, %v457, %v459
  %v461 = vsel %vm449, %v439, %v442
  %v462 = vsel %vm452, %v448, 1326507024
  %v463 = vsel %vm451, %v445, %v462
  %v464 = vsel %vm450, %v461, %v463
  %v465 = vshll.u32 %v425, 8
  %v466 = vmul.u32.u64.compose %v465, %v464
  %v467 = vextract.low.u32 %v466
  %v468 = vextract.high.u32 %v466
  %v469 = vmul.u32.u64.compose %v465, %v460
  %v470 = vextract.low.u32 %v469
  %v471 = vextract.high.u32 %v469
  %v472 = vmul.u32 %v465, %v456
  %v473 = vadd.s32 %v468, %v470
  %vm474 = vc.u32 %v468, %v470
  %v475 = vadd.s32 %v471, 1
  %v476 = vsel %vm474, %v475, %v471
  %v477 = vadd.s32 %v472, %v476
  %v478 = vadd.s32 %v477, 536870912
  %v479 = vshrl.u32 %v478, 30
  %v480 = vshll.u32 %v479, 30
  %v481 = vsub.s32 %v477, %v480
  %vm482 = vcmp.lt.s32.totalorder %v481, 0
  %v483 = vsub.s32 0, %v481
  %v484 = vsel %vm482, %v483, %v481
  %v485 = vclz %v484
  %v486 = vsub.s32 %v485, 2
  %vm487 = vcmp.gt.s32.totalorder 0, %v486
  %v488 = vsel %vm487, 0, %v486
  %v489 = vsub.s32 32, %v488
  %v490 = vshll.u32 %v481, %v488
  %v491 = vshrl.u32 %v473, %v489
  %v492 = vor.u32 %v490, %v491
  %v493 = vsub.s32 4294967266, %v488
  %v494 = vadd.s32 %v493, 127
  %v495 = vshll.u32 %v494, 23
  %v496 = vor.u32 4788187, %v495
  %v497 = vand.u32 2147483647, %v496
  %v499 = vcvt.s32.f32 %v492
  %v500 = vmul.f32 %v499, %v497
  %v501 = vxor.u32 %v500, 2147483648
  %v502 = vsel %vm419, %v501, %v500
  %v503 = vsub.s32 4, %v479
  %v504 = vsel %vm419, %v503, %v479
  %v505 = vsel %vm418, %v209, %v502
  %v506 = vsel %vm418, 0, %v504
  %v507 = vcosq.f32.pop %v505
  %v508 = vsinq.f32.pop %v505
  %vm509 = vweird.f32 %v209
  %v510 = vand.u32 %v506, 3
  %vm511 = vcmp.lt.s32.totalorder %v510, 2
  %vm512 = vcmp.eq.s32.totalorder %v510, 0
  %v513 = vxor.u32 %v508, 2147483648
  %v514 = vsel %vm512, %v507, %v513
  %vm515 = vcmp.eq.s32.totalorder %v510, 2
  %v516 = vxor.u32 %v507, 2147483648
  %v517 = vsel %vm515, %v516, %v508
  %v518 = vsel %vm511, %v514, %v517
  %v519 = vsel %vm509, nan, %v518
  %v520 = vand.u32 2147483647, %v210
  %vm521 = vcmp.le.f32.partialorder %v520, 0.7853982
  %vm522 = vcmp.lt.s32.totalorder %v210, 0
  %v523 = vand.u32 %v210, 2139095040
  %v524 = vshrl.u32 %v523, 23
  %v525 = vsub.s32 %v524, 127
  %v526 = vand.u32 2147483647, %v210
  %v527 = vand.u32 %v526, 8388607
  %v528 = vor.u32 %v527, 8388608
  %v529 = vsub.s32 0, %v528
  %v530 = vadd.s32 %v525, 1
  %vm531 = vcmp.gt.s32.totalorder %v530, 0
  %v532 = vsel %vm531, %v530, 0
  %v533 = vshrl.u32 %v532, 5
  %v534 = vand.u32 %v532, 31
  %v535 = vsub.s32 32, %v534
  %v536 = vshrl.u32 683565275, %v535
  %v537 = vshll.u32 683565275, %v534
  %v538 = vshrl.u32 2475754826, %v535
  %v539 = vor.u32 %v537, %v538
  %v540 = vshll.u32 2475754826, %v534
  %v541 = vshrl.u32 2131351028, %v535
  %v542 = vor.u32 %v540, %v541
  %v543 = vshll.u32 2131351028, %v534
  %v544 = vshrl.u32 2102212464, %v535
  %v545 = vor.u32 %v543, %v544
  %v546 = vshll.u32 2102212464, %v534
  %v547 = vshrl.u32 920167782, %v535
  %v548 = vor.u32 %v546, %v547
  %v549 = vshll.u32 920167782, %v534
  %v550 = vshrl.u32 1326507024, %v535
  %v551 = vor.u32 %v549, %v550
  %vm552 = vcmp.lt.s32.totalorder %v533, 1
  %vm553 = vcmp.lt.s32.totalorder %v533, 2
  %vm554 = vcmp.lt.s32.totalorder %v533, 3
  %vm555 = vcmp.lt.s32.totalorder %v533, 4
  %v556 = vsel %vm552, %v536, %v539
  %v557 = vsel %vm555, %v545, 2102212464
  %v558 = vsel %vm554, %v542, %v557
  %v559 = vsel %vm553, %v556, %v558
  %v560 = vsel %vm552, %v539, %v542
  %v561 = vsel %vm555, %v548, 920167782
  %v562 = vsel %vm554, %v545, %v561
  %v563 = vsel %vm553, %v560, %v562
  %v564 = vsel %vm552, %v542, %v545
  %v565 = vsel %vm555, %v551, 1326507024
  %v566 = vsel %vm554, %v548, %v565
  %v567 = vsel %vm553, %v564, %v566
  %v568 = vshll.u32 %v528, 8
  %v569 = vmul.u32.u64.compose %v568, %v567
  %v570 = vextract.low.u32 %v569
  %v571 = vextract.high.u32 %v569
  %v572 = vmul.u32.u64.compose %v568, %v563
  %v573 = vextract.low.u32 %v572
  %v574 = vextract.high.u32 %v572
  %v575 = vmul.u32 %v568, %v559
  %v576 = vadd.s32 %v571, %v573
  %vm577 = vc.u32 %v571, %v573
  %v578 = vadd.s32 %v574, 1
  %v579 = vsel %vm577, %v578, %v574
  %v580 = vadd.s32 %v575, %v579
  %v581 = vadd.s32 %v580, 536870912
  %v582 = vshrl.u32 %v581, 30
  %v583 = vshll.u32 %v582, 30
  %v584 = vsub.s32 %v580, %v583
  %vm585 = vcmp.lt.s32.totalorder %v584, 0
  %v586 = vsub.s32 0, %v584
  %v587 = vsel %vm585, %v586, %v584
  %v588 = vclz %v587
  %v589 = vsub.s32 %v588, 2
  %vm590 = vcmp.gt.s32.totalorder 0, %v589
  %v591 = vsel %vm590, 0, %v589
  %v592 = vsub.s32 32, %v591
  %v593 = vshll.u32 %v584, %v591
  %v594 = vshrl.u32 %v576, %v592
  %v595 = vor.u32 %v593, %v594
  %v596 = vsub.s32 4294967266, %v591
  %v597 = vadd.s32 %v596, 127
  %v598 = vshll.u32 %v597, 23
  %v599 = vor.u32 4788187, %v598
  %v600 = vand.u32 2147483647, %v599
  %v602 = vcvt.s32.f32 %v595
  %v603 = vmul.f32 %v602, %v600
  %v604 = vxor.u32 %v603, 2147483648
  %v605 = vsel %vm522, %v604, %v603
  %v606 = vsub.s32 4, %v582
  %v607 = vsel %vm522, %v606, %v582
  %v608 = vsel %vm521, %v210, %v605
  %v609 = vsel %vm521, 0, %v607
  %v610 = vcosq.f32.pop %v608
  %v611 = vsinq.f32.pop %v608
  %vm612 = vweird.f32 %v210
  %v613 = vand.u32 %v609, 3
  %vm614 = vcmp.lt.s32.totalorder %v613, 2
  %vm615 = vcmp.eq.s32.totalorder %v613, 0
  %v616 = vxor.u32 %v611, 2147483648
  %v617 = vsel %vm615, %v610, %v616
  %vm618 = vcmp.eq.s32.totalorder %v613, 2
  %v619 = vxor.u32 %v610, 2147483648
  %v620 = vsel %vm618, %v619, %v611
  %v621 = vsel %vm614, %v617, %v620
  %v622 = vsel %vm612, nan, %v621
  %v623 = vmul.f32 %v185, %v313
  %v624 = vmul.f32 %v192, %v416
  %v625 = vmul.f32 %v199, %v519
  %v626 = vmul.f32 %v206, %v622
  %v627 = vand.u32 2147483647, %v207
  %vm628 = vcmp.le.f32.partialorder %v627, 0.7853982
  %vm629 = vcmp.lt.s32.totalorder %v207, 0
  %v630 = vand.u32 %v207, 2139095040
  %v631 = vshrl.u32 %v630, 23
  %v632 = vsub.s32 %v631, 127
  %v633 = vand.u32 2147483647, %v207
  %v634 = vand.u32 %v633, 8388607
  %v635 = vor.u32 %v634, 8388608
  %v636 = vsub.s32 0, %v635
  %v637 = vadd.s32 %v632, 1
  %vm638 = vcmp.gt.s32.totalorder %v637, 0
  %v639 = vsel %vm638, %v637, 0
  %v640 = vshrl.u32 %v639, 5
  %v641 = vand.u32 %v639, 31
  %v642 = vsub.s32 32, %v641
  %v643 = vshrl.u32 683565275, %v642
  %v644 = vshll.u32 683565275, %v641
  %v645 = vshrl.u32 2475754826, %v642
  %v646 = vor.u32 %v644, %v645
  %v647 = vshll.u32 2475754826, %v641
  %v648 = vshrl.u32 2131351028, %v642
  %v649 = vor.u32 %v647, %v648
  %v650 = vshll.u32 2131351028, %v641
  %v651 = vshrl.u32 2102212464, %v642
  %v652 = vor.u32 %v650, %v651
  %v653 = vshll.u32 2102212464, %v641
  %v654 = vshrl.u32 920167782, %v642
  %v655 = vor.u32 %v653, %v654
  %v656 = vshll.u32 920167782, %v641
  %v657 = vshrl.u32 1326507024, %v642
  %v658 = vor.u32 %v656, %v657
  %vm659 = vcmp.lt.s32.totalorder %v640, 1
  %vm660 = vcmp.lt.s32.totalorder %v640, 2
  %vm661 = vcmp.lt.s32.totalorder %v640, 3
  %vm662 = vcmp.lt.s32.totalorder %v640, 4
  %v663 = vsel %vm659, %v643, %v646
  %v664 = vsel %vm662, %v652, 2102212464
  %v665 = vsel %vm661, %v649, %v664
  %v666 = vsel %vm660, %v663, %v665
  %v667 = vsel %vm659, %v646, %v649
  %v668 = vsel %vm662, %v655, 920167782
  %v669 = vsel %vm661, %v652, %v668
  %v670 = vsel %vm660, %v667, %v669
  %v671 = vsel %vm659, %v649, %v652
  %v672 = vsel %vm662, %v658, 1326507024
  %v673 = vsel %vm661, %v655, %v672
  %v674 = vsel %vm660, %v671, %v673
  %v675 = vshll.u32 %v635, 8
  %v676 = vmul.u32.u64.compose %v675, %v674
  %v677 = vextract.low.u32 %v676
  %v678 = vextract.high.u32 %v676
  %v679 = vmul.u32.u64.compose %v675, %v670
  %v680 = vextract.low.u32 %v679
  %v681 = vextract.high.u32 %v679
  %v682 = vmul.u32 %v675, %v666
  %v683 = vadd.s32 %v678, %v680
  %vm684 = vc.u32 %v678, %v680
  %v685 = vadd.s32 %v681, 1
  %v686 = vsel %vm684, %v685, %v681
  %v687 = vadd.s32 %v682, %v686
  %v688 = vadd.s32 %v687, 536870912
  %v689 = vshrl.u32 %v688, 30
  %v690 = vshll.u32 %v689, 30
  %v691 = vsub.s32 %v687, %v690
  %vm692 = vcmp.lt.s32.totalorder %v691, 0
  %v693 = vsub.s32 0, %v691
  %v694 = vsel %vm692, %v693, %v691
  %v695 = vclz %v694
  %v696 = vsub.s32 %v695, 2
  %vm697 = vcmp.gt.s32.totalorder 0, %v696
  %v698 = vsel %vm697, 0, %v696
  %v699 = vsub.s32 32, %v698
  %v700 = vshll.u32 %v691, %v698
  %v701 = vshrl.u32 %v683, %v699
  %v702 = vor.u32 %v700, %v701
  %v703 = vsub.s32 4294967266, %v698
  %v704 = vadd.s32 %v703, 127
  %v705 = vshll.u32 %v704, 23
  %v706 = vor.u32 4788187, %v705
  %v707 = vand.u32 2147483647, %v706
  %v709 = vcvt.s32.f32 %v702
  %v710 = vmul.f32 %v709, %v707
  %v711 = vxor.u32 %v710, 2147483648
  %v712 = vsel %vm629, %v711, %v710
  %v713 = vsub.s32 4, %v689
  %v714 = vsel %vm629, %v713, %v689
  %v715 = vsel %vm628, %v207, %v712
  %v716 = vsel %vm628, 0, %v714
  %v717 = vcosq.f32.pop %v715
  %v718 = vsinq.f32.pop %v715
  %vm719 = vweird.f32 %v207
  %v720 = vadd.s32 %v716, 3
  %v721 = vand.u32 %v720, 3
  %vm722 = vcmp.lt.s32.totalorder %v721, 2
  %vm723 = vcmp.eq.s32.totalorder %v721, 0
  %v724 = vxor.u32 %v718, 2147483648
  %v725 = vsel %vm723, %v717, %v724
  %vm726 = vcmp.eq.s32.totalorder %v721, 2
  %v727 = vxor.u32 %v717, 2147483648
  %v728 = vsel %vm726, %v727, %v718
  %v729 = vsel %vm722, %v725, %v728
  %v730 = vsel %vm719, nan, %v729
  %v731 = vand.u32 2147483647, %v208
  %vm732 = vcmp.le.f32.partialorder %v731, 0.7853982
  %vm733 = vcmp.lt.s32.totalorder %v208, 0
  %v734 = vand.u32 %v208, 2139095040
  %v735 = vshrl.u32 %v734, 23
  %v736 = vsub.s32 %v735, 127
  %v737 = vand.u32 2147483647, %v208
  %v738 = vand.u32 %v737, 8388607
  %v739 = vor.u32 %v738, 8388608
  %v740 = vsub.s32 0, %v739
  %v741 = vadd.s32 %v736, 1
  %vm742 = vcmp.gt.s32.totalorder %v741, 0
  %v743 = vsel %vm742, %v741, 0
  %v744 = vshrl.u32 %v743, 5
  %v745 = vand.u32 %v743, 31
  %v746 = vsub.s32 32, %v745
  %v747 = vshrl.u32 683565275, %v746
  %v748 = vshll.u32 683565275, %v745
  %v749 = vshrl.u32 2475754826, %v746
  %v750 = vor.u32 %v748, %v749
  %v751 = vshll.u32 2475754826, %v745
  %v752 = vshrl.u32 2131351028, %v746
  %v753 = vor.u32 %v751, %v752
  %v754 = vshll.u32 2131351028, %v745
  %v755 = vshrl.u32 2102212464, %v746
  %v756 = vor.u32 %v754, %v755
  %v757 = vshll.u32 2102212464, %v745
  %v758 = vshrl.u32 920167782, %v746
  %v759 = vor.u32 %v757, %v758
  %v760 = vshll.u32 920167782, %v745
  %v761 = vshrl.u32 1326507024, %v746
  %v762 = vor.u32 %v760, %v761
  %vm763 = vcmp.lt.s32.totalorder %v744, 1
  %vm764 = vcmp.lt.s32.totalorder %v744, 2
  %vm765 = vcmp.lt.s32.totalorder %v744, 3
  %vm766 = vcmp.lt.s32.totalorder %v744, 4
  %v767 = vsel %vm763, %v747, %v750
  %v768 = vsel %vm766, %v756, 2102212464
  %v769 = vsel %vm765, %v753, %v768
  %v770 = vsel %vm764, %v767, %v769
  %v771 = vsel %vm763, %v750, %v753
  %v772 = vsel %vm766, %v759, 920167782
  %v773 = vsel %vm765, %v756, %v772
  %v774 = vsel %vm764, %v771, %v773
  %v775 = vsel %vm763, %v753, %v756
  %v776 = vsel %vm766, %v762, 1326507024
  %v777 = vsel %vm765, %v759, %v776
  %v778 = vsel %vm764, %v775, %v777
  %v779 = vshll.u32 %v739, 8
  %v780 = vmul.u32.u64.compose %v779, %v778
  %v781 = vextract.low.u32 %v780
  %v782 = vextract.high.u32 %v780
  %v783 = vmul.u32.u64.compose %v779, %v774
  %v784 = vextract.low.u32 %v783
  %v785 = vextract.high.u32 %v783
  %v786 = vmul.u32 %v779, %v770
  %v787 = vadd.s32 %v782, %v784
  %vm788 = vc.u32 %v782, %v784
  %v789 = vadd.s32 %v785, 1
  %v790 = vsel %vm788, %v789, %v785
  %v791 = vadd.s32 %v786, %v790
  %v792 = vadd.s32 %v791, 536870912
  %v793 = vshrl.u32 %v792, 30
  %v794 = vshll.u32 %v793, 30
  %v795 = vsub.s32 %v791, %v794
  %vm796 = vcmp.lt.s32.totalorder %v795, 0
  %v797 = vsub.s32 0, %v795
  %v798 = vsel %vm796, %v797, %v795
  %v799 = vclz %v798
  %v800 = vsub.s32 %v799, 2
  %vm801 = vcmp.gt.s32.totalorder 0, %v800
  %v802 = vsel %vm801, 0, %v800
  %v803 = vsub.s32 32, %v802
  %v804 = vshll.u32 %v795, %v802
  %v805 = vshrl.u32 %v787, %v803
  %v806 = vor.u32 %v804, %v805
  %v807 = vsub.s32 4294967266, %v802
  %v808 = vadd.s32 %v807, 127
  %v809 = vshll.u32 %v808, 23
  %v810 = vor.u32 4788187, %v809
  %v811 = vand.u32 2147483647, %v810
  %v813 = vcvt.s32.f32 %v806
  %v814 = vmul.f32 %v813, %v811
  %v815 = vxor.u32 %v814, 2147483648
  %v816 = vsel %vm733, %v815, %v814
  %v817 = vsub.s32 4, %v793
  %v818 = vsel %vm733, %v817, %v793
  %v819 = vsel %vm732, %v208, %v816
  %v820 = vsel %vm732, 0, %v818
  %v821 = vcosq.f32.pop %v819
  %v822 = vsinq.f32.pop %v819
  %vm823 = vweird.f32 %v208
  %v824 = vadd.s32 %v820, 3
  %v825 = vand.u32 %v824, 3
  %vm826 = vcmp.lt.s32.totalorder %v825, 2
  %vm827 = vcmp.eq.s32.totalorder %v825, 0
  %v828 = vxor.u32 %v822, 2147483648
  %v829 = vsel %vm827, %v821, %v828
  %vm830 = vcmp.eq.s32.totalorder %v825, 2
  %v831 = vxor.u32 %v821, 2147483648
  %v832 = vsel %vm830, %v831, %v822
  %v833 = vsel %vm826, %v829, %v832
  %v834 = vsel %vm823, nan, %v833
  %v835 = vand.u32 2147483647, %v209
  %vm836 = vcmp.le.f32.partialorder %v835, 0.7853982
  %vm837 = vcmp.lt.s32.totalorder %v209, 0
  %v838 = vand.u32 %v209, 2139095040
  %v839 = vshrl.u32 %v838, 23
  %v840 = vsub.s32 %v839, 127
  %v841 = vand.u32 2147483647, %v209
  %v842 = vand.u32 %v841, 8388607
  %v843 = vor.u32 %v842, 8388608
  %v844 = vsub.s32 0, %v843
  %v845 = vadd.s32 %v840, 1
  %vm846 = vcmp.gt.s32.totalorder %v845, 0
  %v847 = vsel %vm846, %v845, 0
  %v848 = vshrl.u32 %v847, 5
  %v849 = vand.u32 %v847, 31
  %v850 = vsub.s32 32, %v849
  %v851 = vshrl.u32 683565275, %v850
  %v852 = vshll.u32 683565275, %v849
  %v853 = vshrl.u32 2475754826, %v850
  %v854 = vor.u32 %v852, %v853
  %v855 = vshll.u32 2475754826, %v849
  %v856 = vshrl.u32 2131351028, %v850
  %v857 = vor.u32 %v855, %v856
  %v858 = vshll.u32 2131351028, %v849
  %v859 = vshrl.u32 2102212464, %v850
  %v860 = vor.u32 %v858, %v859
  %v861 = vshll.u32 2102212464, %v849
  %v862 = vshrl.u32 920167782, %v850
  %v863 = vor.u32 %v861, %v862
  %v864 = vshll.u32 920167782, %v849
  %v865 = vshrl.u32 1326507024, %v850
  %v866 = vor.u32 %v864, %v865
  %vm867 = vcmp.lt.s32.totalorder %v848, 1
  %vm868 = vcmp.lt.s32.totalorder %v848, 2
  %vm869 = vcmp.lt.s32.totalorder %v848, 3
  %vm870 = vcmp.lt.s32.totalorder %v848, 4
  %v871 = vsel %vm867, %v851, %v854
  %v872 = vsel %vm870, %v860, 2102212464
  %v873 = vsel %vm869, %v857, %v872
  %v874 = vsel %vm868, %v871, %v873
  %v875 = vsel %vm867, %v854, %v857
  %v876 = vsel %vm870, %v863, 920167782
  %v877 = vsel %vm869, %v860, %v876
  %v878 = vsel %vm868, %v875, %v877
  %v879 = vsel %vm867, %v857, %v860
  %v880 = vsel %vm870, %v866, 1326507024
  %v881 = vsel %vm869, %v863, %v880
  %v882 = vsel %vm868, %v879, %v881
  %v883 = vshll.u32 %v843, 8
  %v884 = vmul.u32.u64.compose %v883, %v882
  %v885 = vextract.low.u32 %v884
  %v886 = vextract.high.u32 %v884
  %v887 = vmul.u32.u64.compose %v883, %v878
  %v888 = vextract.low.u32 %v887
  %v889 = vextract.high.u32 %v887
  %v890 = vmul.u32 %v883, %v874
  %v891 = vadd.s32 %v886, %v888
  %vm892 = vc.u32 %v886, %v888
  %v893 = vadd.s32 %v889, 1
  %v894 = vsel %vm892, %v893, %v889
  %v895 = vadd.s32 %v890, %v894
  %v896 = vadd.s32 %v895, 536870912
  %v897 = vshrl.u32 %v896, 30
  %v898 = vshll.u32 %v897, 30
  %v899 = vsub.s32 %v895, %v898
  %vm900 = vcmp.lt.s32.totalorder %v899, 0
  %v901 = vsub.s32 0, %v899
  %v902 = vsel %vm900, %v901, %v899
  %v903 = vclz %v902
  %v904 = vsub.s32 %v903, 2
  %vm905 = vcmp.gt.s32.totalorder 0, %v904
  %v906 = vsel %vm905, 0, %v904
  %v907 = vsub.s32 32, %v906
  %v908 = vshll.u32 %v899, %v906
  %v909 = vshrl.u32 %v891, %v907
  %v910 = vor.u32 %v908, %v909
  %v911 = vsub.s32 4294967266, %v906
  %v912 = vadd.s32 %v911, 127
  %v913 = vshll.u32 %v912, 23
  %v914 = vor.u32 4788187, %v913
  %v915 = vand.u32 2147483647, %v914
  %v917 = vcvt.s32.f32 %v910
  %v918 = vmul.f32 %v917, %v915
  %v919 = vxor.u32 %v918, 2147483648
  %v920 = vsel %vm837, %v919, %v918
  %v921 = vsub.s32 4, %v897
  %v922 = vsel %vm837, %v921, %v897
  %v923 = vsel %vm836, %v209, %v920
  %v924 = vsel %vm836, 0, %v922
  %v925 = vcosq.f32.pop %v923
  %v926 = vsinq.f32.pop %v923
  %vm927 = vweird.f32 %v209
  %v928 = vadd.s32 %v924, 3
  %v929 = vand.u32 %v928, 3
  %vm930 = vcmp.lt.s32.totalorder %v929, 2
  %vm931 = vcmp.eq.s32.totalorder %v929, 0
  %v932 = vxor.u32 %v926, 2147483648
  %v933 = vsel %vm931, %v925, %v932
  %vm934 = vcmp.eq.s32.totalorder %v929, 2
  %v935 = vxor.u32 %v925, 2147483648
  %v936 = vsel %vm934, %v935, %v926
  %v937 = vsel %vm930, %v933, %v936
  %v938 = vsel %vm927, nan, %v937
  %v939 = vand.u32 2147483647, %v210
  %vm940 = vcmp.le.f32.partialorder %v939, 0.7853982
  %vm941 = vcmp.lt.s32.totalorder %v210, 0
  %v942 = vand.u32 %v210, 2139095040
  %v943 = vshrl.u32 %v942, 23
  %v944 = vsub.s32 %v943, 127
  %v945 = vand.u32 2147483647, %v210
  %v946 = vand.u32 %v945, 8388607
  %v947 = vor.u32 %v946, 8388608
  %v948 = vsub.s32 0, %v947
  %v949 = vadd.s32 %v944, 1
  %vm950 = vcmp.gt.s32.totalorder %v949, 0
  %v951 = vsel %vm950, %v949, 0
  %v952 = vshrl.u32 %v951, 5
  %v953 = vand.u32 %v951, 31
  %v954 = vsub.s32 32, %v953
  %v955 = vshrl.u32 683565275, %v954
  %v956 = vshll.u32 683565275, %v953
  %v957 = vshrl.u32 2475754826, %v954
  %v958 = vor.u32 %v956, %v957
  %v959 = vshll.u32 2475754826, %v953
  %v960 = vshrl.u32 2131351028, %v954
  %v961 = vor.u32 %v959, %v960
  %v962 = vshll.u32 2131351028, %v953
  %v963 = vshrl.u32 2102212464, %v954
  %v964 = vor.u32 %v962, %v963
  %v965 = vshll.u32 2102212464, %v953
  %v966 = vshrl.u32 920167782, %v954
  %v967 = vor.u32 %v965, %v966
  %v968 = vshll.u32 920167782, %v953
  %v969 = vshrl.u32 1326507024, %v954
  %v970 = vor.u32 %v968, %v969
  %vm971 = vcmp.lt.s32.totalorder %v952, 1
  %vm972 = vcmp.lt.s32.totalorder %v952, 2
  %vm973 = vcmp.lt.s32.totalorder %v952, 3
  %vm974 = vcmp.lt.s32.totalorder %v952, 4
  %v975 = vsel %vm971, %v955, %v958
  %v976 = vsel %vm974, %v964, 2102212464
  %v977 = vsel %vm973, %v961, %v976
  %v978 = vsel %vm972, %v975, %v977
  %v979 = vsel %vm971, %v958, %v961
  %v980 = vsel %vm974, %v967, 920167782
  %v981 = vsel %vm973, %v964, %v980
  %v982 = vsel %vm972, %v979, %v981
  %v983 = vsel %vm971, %v961, %v964
  %v984 = vsel %vm974, %v970, 1326507024
  %v985 = vsel %vm973, %v967, %v984
  %v986 = vsel %vm972, %v983, %v985
  %v987 = vshll.u32 %v947, 8
  %v988 = vmul.u32.u64.compose %v987, %v986
  %v989 = vextract.low.u32 %v988
  %v990 = vextract.high.u32 %v988
  %v991 = vmul.u32.u64.compose %v987, %v982
  %v992 = vextract.low.u32 %v991
  %v993 = vextract.high.u32 %v991
  %v994 = vmul.u32 %v987, %v978
  %v995 = vadd.s32 %v990, %v992
  %vm996 = vc.u32 %v990, %v992
  %v997 = vadd.s32 %v993, 1
  %v998 = vsel %vm996, %v997, %v993
  %v999 = vadd.s32 %v994, %v998
  %v1000 = vadd.s32 %v999, 536870912
  %v1001 = vshrl.u32 %v1000, 30
  %v1002 = vshll.u32 %v1001, 30
  %v1003 = vsub.s32 %v999, %v1002
  %vm1004 = vcmp.lt.s32.totalorder %v1003, 0
  %v1005 = vsub.s32 0, %v1003
  %v1006 = vsel %vm1004, %v1005, %v1003
  %v1007 = vclz %v1006
  %v1008 = vsub.s32 %v1007, 2
  %vm1009 = vcmp.gt.s32.totalorder 0, %v1008
  %v1010 = vsel %vm1009, 0, %v1008
  %v1011 = vsub.s32 32, %v1010
  %v1012 = vshll.u32 %v1003, %v1010
  %v1013 = vshrl.u32 %v995, %v1011
  %v1014 = vor.u32 %v1012, %v1013
  %v1015 = vsub.s32 4294967266, %v1010
  %v1016 = vadd.s32 %v1015, 127
  %v1017 = vshll.u32 %v1016, 23
  %v1018 = vor.u32 4788187, %v1017
  %v1019 = vand.u32 2147483647, %v1018
  %v1021 = vcvt.s32.f32 %v1014
  %v1022 = vmul.f32 %v1021, %v1019
  %v1023 = vxor.u32 %v1022, 2147483648
  %v1024 = vsel %vm941, %v1023, %v1022
  %v1025 = vsub.s32 4, %v1001
  %v1026 = vsel %vm941, %v1025, %v1001
  %v1027 = vsel %vm940, %v210, %v1024
  %v1028 = vsel %vm940, 0, %v1026
  %v1029 = vcosq.f32.pop %v1027
  %v1030 = vsinq.f32.pop %v1027
  %vm1031 = vweird.f32 %v210
  %v1032 = vadd.s32 %v1028, 3
  %v1033 = vand.u32 %v1032, 3
  %vm1034 = vcmp.lt.s32.totalorder %v1033, 2
  %vm1035 = vcmp.eq.s32.totalorder %v1033, 0
  %v1036 = vxor.u32 %v1030, 2147483648
  %v1037 = vsel %vm1035, %v1029, %v1036
  %vm1038 = vcmp.eq.s32.totalorder %v1033, 2
  %v1039 = vxor.u32 %v1029, 2147483648
  %v1040 = vsel %vm1038, %v1039, %v1030
  %v1041 = vsel %vm1034, %v1037, %v1040
  %v1042 = vsel %vm1031, nan, %v1041
  %v1043 = vmul.f32 %v185, %v730
  %v1044 = vmul.f32 %v192, %v834
  %v1045 = vmul.f32 %v199, %v938
  %v1046 = vmul.f32 %v206, %v1042
  %v1047 = vld [vmem:[%s2] sm:$0xff]
  %v1048 = vld [vmem:[%s2 + $0x8] sm:$0xff]
  %v1049 = vld [vmem:[%s1] sm:$0x3]
  %1051 = vset.pattern.permute.xlu0 0
  %1052 = vperm.xlu0 %1051, %v1049
  %v1053 = vpop.permute.xlu0 %1052
  %v1055 = vmul.f32 %v623, %v1053
  %v1056 = vmul.f32 %v624, %v1053
  %v1057 = vmul.f32 %v625, %v1053
  %v1058 = vmul.f32 %v626, %v1053
  %v1059 = vmul.f32 %v1043, %v1053
  %v1060 = vmul.f32 %v1044, %v1053
  %v1061 = vmul.f32 %v1045, %v1053
  %v1062 = vmul.f32 %v1046, %v1053
  %v1071 = vcombine.low %v1055, %v1056
  %v1072 = vcombine.low %v1057, %v1058
  %v1074 = vunpack.c.l.s4 1983009808
  %v1075 = vunpack.c.0.s8 %v1074
  %v1076 = vlaneseq
  %v1077 = vshrl.u32 %v1076, 7
  %v1078 = vsub.s32 %v1075, %v1077
  %v1079 = vrot.slane %v1071, %v1078
  %v1081 = vunpack.c.l.s4 1983009808
  %v1082 = vunpack.c.0.s8 %v1081
  %v1083 = vlaneseq
  %v1084 = vshrl.u32 %v1083, 7
  %v1085 = vsub.s32 %v1082, %v1084
  %v1086 = vrot.slane %v1072, %v1085
  %v1087 = vcombine.low %v1079, %v1086
  %v1088 = vcombine.low %v1059, %v1060
  %v1089 = vcombine.low %v1061, %v1062
  %v1091 = vunpack.c.l.s4 1983009808
  %v1092 = vunpack.c.0.s8 %v1091
  %v1093 = vlaneseq
  %v1094 = vshrl.u32 %v1093, 7
  %v1095 = vsub.s32 %v1092, %v1094
  %v1096 = vrot.slane %v1088, %v1095
  %v1098 = vunpack.c.l.s4 1983009808
  %v1099 = vunpack.c.0.s8 %v1098
  %v1100 = vlaneseq
  %v1101 = vshrl.u32 %v1100, 7
  %v1102 = vsub.s32 %v1099, %v1101
  %v1103 = vrot.slane %v1089, %v1102
  %v1104 = vcombine.low %v1096, %v1103
  %v1107 = vadd.f32 %v1047, %v1087
  %v1108 = vadd.f32 %v1048, %v1104
  %1109 = vst [vmem:[%s3] sm:$0xff] %v1107
  %1110 = vst [vmem:[%s3 + $0x8] sm:$0xff] %v1108
  // Predicated region
  $region14: #{fixed_gaussian_noise.1} parent=0 // pred_check
    _
  $region15: #{fixed_gaussian_noise.1} parent=0 // pred_check_branch
    %1112 = sbr.rel (0) target = $region17
  $region16: #{fixed_gaussian_noise.1} parent=0 // pred_region
    _
  $region17: #{fixed_gaussian_noise.1} parent=0 // pred_fallthru
    _
  // Predicated region
  $region18: #{fixed_gaussian_noise.1} parent=0 // pred_check
    _
  $region19: #{fixed_gaussian_noise.1} parent=0 // pred_check_branch
    %1114 = sbr.rel (0) target = $region21
  $region20: #{fixed_gaussian_noise.1} parent=0 // pred_region
    _
  $region21: #{fixed_gaussian_noise.1} parent=0 // pred_fallthru
    _

</llo_original>
